<compile_context>
chip_gen: v6e
topology: v6e:2x2x1
jax: 0.10.0
libtpu: 0.0.40
codegen_flags: <defaults>
</compile_context>

<pallas_src>
import functools

import numpy as np
import jax
import jax.numpy as jnp
from jax import lax
from jax.experimental import pallas as pl
from jax.experimental.pallas import tpu as pltpu


def _round_up(x, m):
    return ((x + m - 1) // m) * m


def _spatial_transformer_kernel(src_ref, coord_ref, out_ref, *, PP, CHUNK, use_bf16):
    # src_ref  : (1, C*PP, KP)  source; rows = (channel, stage-2 index),
    #                           cols = contracted spatial dim (zero-padded to KP)
    # coord_ref: (1, 2, T)      [0] = coordinate along contracted dim,
    #                           [1] = coordinate along stage-2 dim
    # out_ref  : (1, C, T)      warped output for this pixel tile
    C = out_ref.shape[1]
    T = out_ref.shape[2]
    KP = src_ref.shape[2]

    src2d = src_ref[0]                                    # (C*PP, KP)
    c1 = coord_ref[0, 0:1, :]                             # (1, T)
    c2 = coord_ref[0, 1:2, :]                             # (1, T)

    # Stage-1 triangular (bilinear) weights over the contracted dim.
    # Out-of-range taps get weight 0 and padded source columns are 0, which
    # together reproduce padding_mode='zeros'.
    k = lax.broadcasted_iota(jnp.int32, (KP, 1), 0).astype(jnp.float32)
    w1 = jnp.maximum(1.0 - jnp.abs(c1 - k), 0.0)          # (KP, T)

    lhs = src2d
    if use_bf16:
        lhs = lhs.astype(jnp.bfloat16)
        w1 = w1.astype(jnp.bfloat16)

    # Stage 1 (MXU): contract the (padded, lane-dense) larger spatial dim.
    tmp = jnp.dot(lhs, w1, preferred_element_type=jnp.float32)   # (C*PP, T)
    tmp3 = tmp.reshape(C, PP, T)                                  # free: PP % 8 == 0

    # Stage-2 triangular weights over the other spatial dim.
    p = lax.broadcasted_iota(jnp.int32, (PP, 1), 0).astype(jnp.float32)
    w2 = jnp.maximum(1.0 - jnp.abs(c2 - p), 0.0)          # (PP, T)

    # Stage 2 (VPU): chunked weighted reduction over the stage-2 dim; only a
    # (C, CHUNK, T) product is ever live (never the full (C, PP, T) tensor).
    out = jnp.zeros((C, T), jnp.float32)
    for off in range(0, PP, CHUNK):
        sz = min(CHUNK, PP - off)                          # always a multiple of 8
        out = out + jnp.sum(
            tmp3[:, off:off + sz, :] * w2[off:off + sz, :][None, :, :], axis=1)
    out_ref[0] = out.astype(out_ref.dtype)


def _vmem_budget_bytes():
    """Generation-aware VMEM budget with headroom for compiler scratch/spill."""
    cap = 64 * 1024 * 1024                     # assume v7x-sized per-TC VMEM if unknown
    try:
        info = pltpu.get_tpu_info()
        cap = int(getattr(info, "vmem_capacity_bytes", cap) or cap)
    except Exception:
        pass
    # v7x (64 MiB)  -> ~48 MiB;  v5e/v6e (128 MiB) -> ~96 MiB.
    return int(min(cap * 3 // 4, cap - 12 * 1024 * 1024))


def _vmem_estimate_bytes(C, PP, KP, T, CHUNK):
    f32 = 4
    return f32 * (
        2 * C * PP * KP              # resident source block (double-buffered)
        + 2 * 2 * T                  # coordinate block (x2 pipeline buffers)
        + 2 * C * T                  # output block (x2)
        + (KP + PP) * T              # stage-1 / stage-2 weights
        + C * PP * T                 # stage-1 matmul result
        + C * CHUNK * T + 2 * C * T  # per-chunk product + accumulator + temps
    )


def _pick_tile(HW, N, C, PP, KP, CHUNK, budget):
    """Largest lane-dense output tile (multiple of 128) that fits the budget.

    When N == 1, keep at least 2 tiles so both v7x TensorCores get work.
    """
    top = min(1024, _round_up(HW, 128))
    best = 128
    for T in range(top, 127, -128):
        if _vmem_estimate_bytes(C, PP, KP, T, CHUNK) > (budget * 4) // 5:
            continue
        if N == 1 and T > 128 and -(-HW // T) < 2:
            continue
        best = T
        break
    return best


def spatial_transformer(src, flow, *, use_bf16=False):
    """src: (N, C, H, W) float32, flow: (N, 2, H, W) float32 -> (N, C, H, W)."""
    N, C, H, W = src.shape
    assert flow.shape == (N, 2, H, W)
    HW = H * W
    f32 = jnp.float32

    # Absolute sample coordinates (meshgrid + flow), hoisted out of the kernel.
    gi = jnp.arange(H, dtype=f32)[:, None]                 # (H, 1)
    gj = jnp.arange(W, dtype=f32)[None, :]                 # (1, W)
    coord_row = gi + flow[:, 0]                            # (N, H, W)
    coord_col = gj + flow[:, 1]                            # (N, H, W)

    # Contract the LARGER spatial dim on the MXU; the other dim is reduced in
    # stage 2.  The contracted dim is zero-padded to a multiple of 128 so the
    # MXU K dim and the source's lane dim are dense.
    contract_cols = W >= H
    if contract_cols:
        K0, P0 = W, H
        src_r = src                                        # (N, C, P0=H, K0=W)
        coord1, coord2 = coord_col, coord_row
    else:
        K0, P0 = H, W
        src_r = jnp.swapaxes(src, 2, 3)                    # (N, C, P0=W, K0=H)
        coord1, coord2 = coord_row, coord_col

    KP = _round_up(K0, 128)      # MXU contraction / lane dim
    PP = _round_up(P0, 8)        # stage-2 / sublane dim
    src_p = jnp.pad(src_r, ((0, 0), (0, 0), (0, PP - P0), (0, KP - K0)))
    src2d = src_p.reshape(N, C * PP, KP)

    CHUNK = min(PP, 32)
    budget = _vmem_budget_bytes()
    T = _pick_tile(HW, N, C, PP, KP, CHUNK, budget)
    HWp = _round_up(HW, T)
    num_tiles = HWp // T

    coords = jnp.stack([coord1.reshape(N, HW), coord2.reshape(N, HW)], axis=1)  # (N, 2, HW)
    if HWp > HW:
        # Padded output pixels get out-of-range coordinates -> all weights zero.
        coords = jnp.pad(coords, ((0, 0), (0, 0), (0, HWp - HW)),
                         constant_values=-2.0)

    kernel = functools.partial(_spatial_transformer_kernel,
                               PP=PP, CHUNK=CHUNK, use_bf16=use_bf16)

    out_flat = pl.pallas_call(
        kernel,
        out_shape=jax.ShapeDtypeStruct((N, C, HWp), src.dtype),
        grid_spec=pltpu.PrefetchScalarGridSpec(
            num_scalar_prefetch=0,
            grid=(N, num_tiles),
            in_specs=[
                # Source stays resident across the output-tile axis.
                # TODO(synk): single-buffer this block (pl.Buffered(1)) on v7x once
                # pipeline_mode on top-level BlockSpecs is confirmed supported.
                pl.BlockSpec((1, C * PP, KP), lambda n, t: (n, 0, 0)),
                pl.BlockSpec((1, 2, T), lambda n, t: (n, 0, t)),
            ],
            out_specs=pl.BlockSpec((1, C, T), lambda n, t: (n, 0, t)),
        ),
        compiler_params=pltpu.CompilerParams(
            dimension_semantics=("parallel", "parallel"),
            vmem_limit_bytes=budget,
        ),
    )(src2d, coords)

    # TODO(synk): for large images with bounded |flow|, switch to 2-D
    # (row-band x col-band) output tiling so both weight supports shrink to
    # band_extent + 2*bound instead of the full spatial extents.
    return out_flat[:, :, :HW].reshape(N, C, H, W)


def _reference(src, flow):
    """Direct numpy bilinear grid_sample (align_corners=True, zeros padding)."""
    N, C, H, W = src.shape
    out = np.zeros_like(src)
    for n in range(N):
        for i in range(H):
            for j in range(W):
                r = i + flow[n, 0, i, j]
                c = j + flow[n, 1, i, j]
                r0 = int(np.floor(r))
                c0 = int(np.floor(c))
                for pr, wr in ((r0, r0 + 1 - r), (r0 + 1, r - r0)):
                    for pc, wc in ((c0, c0 + 1 - c), (c0 + 1, c - c0)):
                        if 0 <= pr < H and 0 <= pc < W:
                            out[n, :, i, j] += src[n, :, pr, pc] * wr * wc
    return out


if __name__ == "__main__":
    # SpatialTransformer has no learnable parameters — only the coordinate grid
    # buffer, which is folded into the flow on the host (grid + flow).
    N, C, H, W = 2, 4, 16, 16
    key = jax.random.PRNGKey(0)
    k_src, k_flow = jax.random.split(key)
    src = jax.random.normal(k_src, (N, C, H, W), dtype=jnp.float32)
    # Moderate displacements, including out-of-bounds samples (tests zero padding).
    flow = 3.0 * jax.random.normal(k_flow, (N, 2, H, W), dtype=jnp.float32)

    out = jax.jit(spatial_transformer)(src, flow)
    out = jax.block_until_ready(out)

    ref = _reference(np.asarray(src), np.asarray(flow))
    np.testing.assert_allclose(np.asarray(out), ref, rtol=1e-4, atol=1e-4)

    print("KERNEL_OK")
</pallas_src>

<mosaic_0001>
module attributes {stable_mosaic.version = 11 : i64} {
  func.func @_spatial_transformer_kernel(%arg0: i32, %arg1: i32, %arg2: memref<1x64x128xf32, #tpu.memory_space<vmem>>, %arg3: memref<1x2x256xf32, #tpu.memory_space<vmem>>, %arg4: memref<1x4x256xf32, #tpu.memory_space<vmem>>) attributes {dimension_semantics = [#tpu.dimension_semantics<parallel>, #tpu.dimension_semantics<parallel>], iteration_bounds = array<i64: 2, 1>, scalar_prefetch = 0 : i64, scratch_operands = 0 : i64, tpu.core_type = #tpu.core_type<tc>, window_params = [{transform_indices = @transform_0, window_bounds = array<i64: 1, 64, 128>}, {transform_indices = @transform_1, window_bounds = array<i64: 1, 2, 256>}, {transform_indices = @transform_2, window_bounds = array<i64: 1, 4, 256>}]} {
    %c0 = arith.constant 0 : index
    %c0_0 = arith.constant 0 : index
    %c0_1 = arith.constant 0 : index
    %0 = vector.load %arg2[%c0, %c0_0, %c0_1] : memref<1x64x128xf32, #tpu.memory_space<vmem>>, vector<1x64x128xf32>
    %1 = vector.shape_cast %0 : vector<1x64x128xf32> to vector<64x128xf32>
    %c0_2 = arith.constant 0 : index
    %c0_3 = arith.constant 0 : index
    %c0_4 = arith.constant 0 : index
    %2 = vector.load %arg3[%c0_2, %c0_3, %c0_4] : memref<1x2x256xf32, #tpu.memory_space<vmem>>, vector<1x1x256xf32>
    %3 = vector.shape_cast %2 : vector<1x1x256xf32> to vector<1x256xf32>
    %c0_5 = arith.constant 0 : index
    %c1 = arith.constant 1 : index
    %c0_6 = arith.constant 0 : index
    %4 = vector.load %arg3[%c0_5, %c1, %c0_6] : memref<1x2x256xf32, #tpu.memory_space<vmem>>, vector<1x1x256xf32>
    %5 = vector.shape_cast %4 : vector<1x1x256xf32> to vector<1x256xf32>
    %6 = tpu.iota {dimensions = array<i32: 0>} : vector<128x1xi32>
    %7 = arith.sitofp %6 : vector<128x1xi32> to vector<128x1xf32>
    %8 = vector.broadcast %3 : vector<1x256xf32> to vector<128x256xf32>
    %9 = vector.broadcast %7 : vector<128x1xf32> to vector<128x256xf32>
    %10 = arith.subf %8, %9 : vector<128x256xf32>
    %11 = math.absf %10 : vector<128x256xf32>
    %cst = arith.constant 1.000000e+00 : f32
    %12 = vector.broadcast %cst : f32 to vector<128x256xf32>
    %13 = arith.subf %12, %11 : vector<128x256xf32>
    %cst_7 = arith.constant 0.000000e+00 : f32
    %14 = vector.broadcast %cst_7 : f32 to vector<128x256xf32>
    %15 = arith.maximumf %13, %14 : vector<128x256xf32>
    %cst_8 = arith.constant dense<0.000000e+00> : vector<64x256xf32>
    %16 = tpu.matmul %1, %15, %cst_8 {dimension_numbers = #tpu.dot_dimension_numbers<[1], [0], [0], [1], [0, 0, 1, 1], [], []>} : vector<64x128xf32>, vector<128x256xf32>, vector<64x256xf32> -> vector<64x256xf32>
    %17 = vector.shape_cast %16 : vector<64x256xf32> to vector<4x16x256xf32>
    %18 = tpu.iota {dimensions = array<i32: 0>} : vector<16x1xi32>
    %19 = arith.sitofp %18 : vector<16x1xi32> to vector<16x1xf32>
    %20 = vector.broadcast %5 : vector<1x256xf32> to vector<16x256xf32>
    %21 = vector.broadcast %19 : vector<16x1xf32> to vector<16x256xf32>
    %22 = arith.subf %20, %21 : vector<16x256xf32>
    %23 = math.absf %22 : vector<16x256xf32>
    %cst_9 = arith.constant 1.000000e+00 : f32
    %24 = vector.broadcast %cst_9 : f32 to vector<16x256xf32>
    %25 = arith.subf %24, %23 : vector<16x256xf32>
    %cst_10 = arith.constant 0.000000e+00 : f32
    %26 = vector.broadcast %cst_10 : f32 to vector<16x256xf32>
    %27 = arith.maximumf %25, %26 : vector<16x256xf32>
    %cst_11 = arith.constant 0.000000e+00 : f32
    %28 = vector.broadcast %cst_11 : f32 to vector<4x256xf32>
    %29 = vector.shape_cast %27 : vector<16x256xf32> to vector<1x16x256xf32>
    %30 = vector.broadcast %29 : vector<1x16x256xf32> to vector<4x16x256xf32>
    %31 = arith.mulf %17, %30 : vector<4x16x256xf32>
    %cst_12 = arith.constant dense<0.000000e+00> : vector<4x256xf32>
    %32 = vector.multi_reduction <add>, %31, %cst_12 [1] : vector<4x16x256xf32> to vector<4x256xf32>
    %33 = arith.addf %28, %32 : vector<4x256xf32>
    %c0_13 = arith.constant 0 : index
    %c0_14 = arith.constant 0 : index
    %c0_15 = arith.constant 0 : index
    %34 = vector.load %arg4[%c0_13, %c0_14, %c0_15] : memref<1x4x256xf32, #tpu.memory_space<vmem>>, vector<1x4x256xf32>
    %35 = vector.shape_cast %34 : vector<1x4x256xf32> to vector<4x256xf32>
    %36 = vector.shape_cast %33 : vector<4x256xf32> to vector<1x4x256xf32>
    tpu.vector_store %arg4[%c0_13, %c0_14, %c0_15], %36 {strides = array<i32>} : memref<1x4x256xf32, #tpu.memory_space<vmem>>, vector<1x4x256xf32>,
    return
  }
  func.func @transform_0(%arg0: i32, %arg1: i32) -> (i32, i32, i32) {
    %c0_i32 = arith.constant 0 : i32
    %c0_i32_0 = arith.constant 0 : i32
    %c0_i32_1 = arith.constant 0 : i32
    return %arg0, %c0_i32, %c0_i32_0 : i32, i32, i32
  }
  func.func @transform_1(%arg0: i32, %arg1: i32) -> (i32, i32, i32) {
    %c0_i32 = arith.constant 0 : i32
    %c0_i32_0 = arith.constant 0 : i32
    return %arg0, %c0_i32, %arg1 : i32, i32, i32
  }
  func.func @transform_2(%arg0: i32, %arg1: i32) -> (i32, i32, i32) {
    %c0_i32 = arith.constant 0 : i32
    %c0_i32_0 = arith.constant 0 : i32
    return %arg0, %c0_i32, %arg1 : i32, i32, i32
  }
}

</mosaic_0001>

<llo_original>
// kernel: spatial_transformer.1
$region0: #{spatial_transformer.1}
  #allocation0 [shape = 'u32[]', space=smem, size = 0x4, offset = 0x4, fixed_abs, tag = 'smem constant byte address 0x4 - core index']
  #allocation1 [shape = 'u32[144,128]{1,0:T(1,128)}', space=vmem, size = 0x12000, scoped, tag = 'internal scratch']
  %s0 = inlined_call_operand.vmem [shape: f32[2,64,128], index: 0, kind: input, shape index: {}]
  %s1 = inlined_call_operand.vmem [shape: f32[2,2,256], index: 1, kind: input, shape index: {}]
  %s2 = inlined_call_operand.vmem [shape: f32[2,4,256], index: 2, kind: output, shape index: {}]
  %s3 = sld [smem:[#allocation0]]
  $region41: #{spatial_transformer.1} parent=0
    _
  %s5 = ssub.s32 1, %s3
  %s6 = scalar_select 0, %s5, %s3
  loop: start=0, step=1, limit=4
  $region2: #{spatial_transformer.1} parent=0 // loop_pre_header
    _
  $region3: #{spatial_transformer.1} parent=0 // loop_header
    %s8 = sphi 0, %s12
    %p9 = scmp.ge.s32.totalorder %s8, 4
    %s15 = sphi 0, %s27
    %s16 = sphi 0, %s23
    %s17 = sphi 0, %s15
    %s18 = sphi 0, %s16
    %s19 = sphi 0, %s17
    %s20 = sphi 0, %s18
    %s30 = sphi 0, %s32
    %s33 = sphi 0, %s30
    %s34 = sphi 0, %s33
    %s50 = sphi 0, %s34
    %s58 = sphi 0, %s60
    %s61 = sphi 0, %s58
    %s62 = sphi 0, %s61
    %s78 = sphi 0, %s62
    %s86 = sphi 0, %s88
    %s89 = sphi 0, %s86
    %s90 = sphi 0, %s89
    %s106 = sphi 0, %s90
  $region4: #{spatial_transformer.1} parent=0 // loop_header_branch
    %11 = sbr.rel (%p9) target = $region8
  $region5: #{spatial_transformer.1} parent=0 // loop_body
    %s13 = ssub.s32 %s8, 1
    %s14 = ssub.s32 %s8, 2
    %s21 = sadd.s32 1, %s16
    %p22 = scmp.ge.s32.totalorder %s21, 1
    %s23 = scalar_select %p22, 0, %s21
    %s24 = sadd.s32 1, %s15
    %s25 = scalar_select %p22, %s24, %s15
    %p26 = scmp.ge.s32.totalorder %s25, 2
    %s27 = scalar_select %p26, 0, %s25
    %s28 = ssub.s32 %s15, %s27
    %p29 = scmp.eq.s32.totalorder %s28, 0
    %s31 = sadd.s32 %s30, 1
    %s32 = scalar_select %p29, %s30, %s31
    %p35 = pneg %p29
    %p36 = scmp.eq.s32.totalorder %s8, 1
    %p37 = por %p35, %p36
    %p38 = scmp.ne.s32.totalorder %s30, %s33
    %p39 = scmp.eq.s32.totalorder %s8, 0
    %p40 = por %p38, %p39
    %p41 = scmp.ne.s32.totalorder %s30, %s33
    %p42 = scmp.eq.s32.totalorder %s13, 1
    %p43 = por %p41, %p42
    %p44 = scmp.ne.s32.totalorder %s33, %s34
    %p45 = scmp.eq.s32.totalorder %s13, 0
    %p46 = por %p44, %p45
    %p47 = scmp.ne.s32.totalorder %s33, %s34
    %p48 = scmp.eq.s32.totalorder %s14, 1
    %p49 = por %p47, %p48
    %p51 = scmp.ne.s32.totalorder %s34, %s50
    %p52 = scmp.eq.s32.totalorder %s14, 0
    %p53 = por %p51, %p52
    %s54 = ssub.s32 %s15, %s27
    %s55 = ssub.s32 %s16, %s23
    %s56 = sor.u32 %s54, %s55
    %p57 = scmp.eq.s32.totalorder %s56, 0
    %s59 = sadd.s32 %s58, 1
    %s60 = scalar_select %p57, %s58, %s59
    %p63 = pneg %p57
    %p64 = scmp.eq.s32.totalorder %s8, 1
    %p65 = por %p63, %p64
    %p66 = scmp.ne.s32.totalorder %s58, %s61
    %p67 = scmp.eq.s32.totalorder %s8, 0
    %p68 = por %p66, %p67
    %p69 = scmp.ne.s32.totalorder %s58, %s61
    %p70 = scmp.eq.s32.totalorder %s13, 1
    %p71 = por %p69, %p70
    %p72 = scmp.ne.s32.totalorder %s61, %s62
    %p73 = scmp.eq.s32.totalorder %s13, 0
    %p74 = por %p72, %p73
    %p75 = scmp.ne.s32.totalorder %s61, %s62
    %p76 = scmp.eq.s32.totalorder %s14, 1
    %p77 = por %p75, %p76
    %p79 = scmp.ne.s32.totalorder %s62, %s78
    %p80 = scmp.eq.s32.totalorder %s14, 0
    %p81 = por %p79, %p80
    %s82 = ssub.s32 %s15, %s27
    %s83 = ssub.s32 %s16, %s23
    %s84 = sor.u32 %s82, %s83
    %p85 = scmp.eq.s32.totalorder %s84, 0
    %s87 = sadd.s32 %s86, 1
    %s88 = scalar_select %p85, %s86, %s87
    %p91 = pneg %p85
    %p92 = scmp.eq.s32.totalorder %s8, 1
    %p93 = por %p91, %p92
    %p94 = scmp.ne.s32.totalorder %s86, %s89
    %p95 = scmp.eq.s32.totalorder %s8, 0
    %p96 = por %p94, %p95
    %p97 = scmp.ne.s32.totalorder %s86, %s89
    %p98 = scmp.eq.s32.totalorder %s13, 1
    %p99 = por %p97, %p98
    %p100 = scmp.ne.s32.totalorder %s89, %s90
    %p101 = scmp.eq.s32.totalorder %s13, 0
    %p102 = por %p100, %p101
    %p103 = scmp.ne.s32.totalorder %s89, %s90
    %p104 = scmp.eq.s32.totalorder %s14, 1
    %p105 = por %p103, %p104
    %p107 = scmp.ne.s32.totalorder %s90, %s106
    %p108 = scmp.eq.s32.totalorder %s14, 0
    %p109 = por %p107, %p108
    %p110 = scmp.le.s32.totalorder 1, %s8
    %p111 = scmp.lt.s32.totalorder %s8, 3
    %p112 = pnand %p110, %p111
    %p113 = pneg %p112
    // Predicated region
    $region9: #{spatial_transformer.1} parent=5 // pred_check
      _
    $region10: #{spatial_transformer.1} parent=5 // pred_check_branch
      %115 = sbr.rel (%p112) target = $region12
    $region11: #{spatial_transformer.1} parent=5 // pred_region
      %s116 = ssub.s32 %s8, 1
    $region12: #{spatial_transformer.1} parent=5 // pred_fallthru
      _
    %p117 = scmp.lt.s32.totalorder %s8, 2
    // Predicated region
    $region13: #{spatial_transformer.1} parent=5 // pred_check
      %p118 = pneg %p117
    $region14: #{spatial_transformer.1} parent=5 // pred_check_branch
      %120 = sbr.rel (%p118) target = $region16
    $region15: #{spatial_transformer.1} parent=5 // pred_region
      // Predicated region
      $region17: #{spatial_transformer.1} parent=15 // pred_check
        %p121 = pneg %p40
      $region18: #{spatial_transformer.1} parent=15 // pred_check_branch
        %123 = sbr.rel (%p121) target = $region20
      $region19: #{spatial_transformer.1} parent=15 // pred_region
        %p124 = scmp.lt.s32.totalorder %s15, 1
        %s125 = scalar_select %p124, %s15, 1
        %s126 = smul.addr %s125, 8
        %s127 = smul.addr %s126, 8
        %s128 = scalar_lea.vmem %s0, %s127
      $region20: #{spatial_transformer.1} parent=15 // pred_fallthru
        _
      // Predicated region
      $region21: #{spatial_transformer.1} parent=15 // pred_check
        %p129 = pneg %p68
      $region22: #{spatial_transformer.1} parent=15 // pred_check_branch
        %131 = sbr.rel (%p129) target = $region24
      $region23: #{spatial_transformer.1} parent=15 // pred_region
        %s132 = smul.u32 2, %s16
        %p133 = scmp.lt.s32.totalorder %s15, 1
        %s134 = scalar_select %p133, %s15, 1
        %p135 = scmp.lt.s32.totalorder %s132, 1
        %s136 = scalar_select %p135, %s132, 1
        %s137 = smul.addr %s134, 2
        %s138 = sadd.s32 %s136, %s137
        %s139 = smul.addr %s138, 2
        %s140 = scalar_lea.vmem %s1, %s139
        %s141 = smul.u32 2, %s16
      $region24: #{spatial_transformer.1} parent=15 // pred_fallthru
        _
    $region16: #{spatial_transformer.1} parent=5 // pred_fallthru
      _
    %p142 = scmp.le.s32.totalorder 1, %s8
    %p143 = scmp.lt.s32.totalorder %s8, 3
    %p144 = pnand %p142, %p143
    %p145 = pneg %p144
    // Predicated region
    $region25: #{spatial_transformer.1} parent=5 // pred_check
      _
    $region26: #{spatial_transformer.1} parent=5 // pred_check_branch
      %147 = sbr.rel (%p144) target = $region28
    $region27: #{spatial_transformer.1} parent=5 // pred_region
      %s148 = ssub.s32 %s8, 1
      %p149 = scmp.lt.s32.totalorder %s17, 1
      %s150 = scalar_select %p149, %s17, 1
      %s151 = smul.addr %s150, 8
      %s152 = smul.addr %s151, 8
      %s153 = scalar_lea.vmem %s0, %s152
      %p154 = pneg %p46
      %p155 = pneg %p43
      %s156 = smul.u32 2, %s18
      %p157 = scmp.lt.s32.totalorder %s17, 1
      %s158 = scalar_select %p157, %s17, 1
      %p159 = scmp.lt.s32.totalorder %s156, 1
      %s160 = scalar_select %p159, %s156, 1
      %s161 = smul.addr %s158, 2
      %s162 = sadd.s32 %s160, %s161
      %s163 = smul.addr %s162, 2
      %s164 = scalar_lea.vmem %s1, %s163
      %p165 = pneg %p74
      %p166 = pneg %p71
      %p167 = pneg %p102
      %p168 = pneg %p99
      %s169 = smul.u32 2, %s18
      %p170 = scmp.lt.s32.totalorder %s17, 1
      %s171 = scalar_select %p170, %s17, 1
      %p172 = scmp.lt.s32.totalorder %s169, 1
      %s173 = scalar_select %p172, %s169, 1
      %s174 = smul.addr %s171, 2
      %s175 = sadd.s32 %s173, %s174
      %s176 = smul.addr %s175, 4
      %s177 = scalar_lea.vmem %s2, %s176
      %p178 = scmp.lt.s32.totalorder %s17, 1
      %s179 = scalar_select %p178, %s17, 1
      %s180 = smul.addr %s179, 8
      %s181 = smul.addr %s180, 8
      %s182 = scalar_lea.vmem %s0, %s181
      %s183 = smul.u32 2, %s18
      %p184 = scmp.lt.s32.totalorder %s17, 1
      %s185 = scalar_select %p184, %s17, 1
      %p186 = scmp.lt.s32.totalorder %s183, 1
      %s187 = scalar_select %p186, %s183, 1
      %s188 = smul.addr %s185, 2
      %s189 = sadd.s32 %s187, %s188
      %s190 = smul.addr %s189, 2
      %s191 = scalar_lea.vmem %s1, %s190
      %s192 = smul.u32 2, %s18
      %s193 = smul.u32 2, %s18
      %p194 = scmp.lt.s32.totalorder %s17, 1
      %s195 = scalar_select %p194, %s17, 1
      %p196 = scmp.lt.s32.totalorder %s193, 1
      %s197 = scalar_select %p196, %s193, 1
      %s198 = smul.addr %s195, 2
      %s199 = sadd.s32 %s197, %s198
      %s200 = smul.addr %s199, 4
      %s201 = scalar_lea.vmem %s2, %s200
      %s202 = smul.u32 2, %s18
      %v203 = vld [vmem:[%s182] sm:$0xff]
      %v204 = vld [vmem:[%s182 + $0x8] sm:$0xff]
      %v205 = vld [vmem:[%s182 + $0x10] sm:$0xff]
      %v206 = vld [vmem:[%s182 + $0x18] sm:$0xff]
      %v207 = vld [vmem:[%s182 + $0x20] sm:$0xff]
      %v208 = vld [vmem:[%s182 + $0x28] sm:$0xff]
      %v209 = vld [vmem:[%s182 + $0x30] sm:$0xff]
      %v210 = vld [vmem:[%s182 + $0x38] sm:$0xff]
      %v211 = vld [vmem:[%s191] ss:$2 sm:$0x3]
      %s212 = scalar_lea.vmem %s191, 1
      %v213 = vld [vmem:[%s212] ss:$2 sm:$0x3]
      %v214 = vlaneseq
      %v215 = vshrl.u32 %v214, 7
      %v216 = vadd.s32 %v215, 8
      %v217 = vadd.s32 %v215, 16
      %v218 = vadd.s32 %v215, 24
      %v219 = vadd.s32 %v215, 32
      %v220 = vadd.s32 %v215, 40
      %v221 = vadd.s32 %v215, 48
      %v222 = vadd.s32 %v215, 56
      %v223 = vadd.s32 %v215, 64
      %v224 = vadd.s32 %v215, 72
      %v225 = vadd.s32 %v215, 80
      %v226 = vadd.s32 %v215, 88
      %v227 = vadd.s32 %v215, 96
      %v228 = vadd.s32 %v215, 104
      %v229 = vadd.s32 %v215, 112
      %v230 = vadd.s32 %v215, 120
      %v231 = vcvt.s32.f32 %v215
      %v232 = vcvt.s32.f32 %v216
      %v233 = vcvt.s32.f32 %v217
      %v234 = vcvt.s32.f32 %v218
      %v235 = vcvt.s32.f32 %v219
      %v236 = vcvt.s32.f32 %v220
      %v237 = vcvt.s32.f32 %v221
      %v238 = vcvt.s32.f32 %v222
      %v239 = vcvt.s32.f32 %v223
      %v240 = vcvt.s32.f32 %v224
      %v241 = vcvt.s32.f32 %v225
      %v242 = vcvt.s32.f32 %v226
      %v243 = vcvt.s32.f32 %v227
      %v244 = vcvt.s32.f32 %v228
      %v245 = vcvt.s32.f32 %v229
      %v246 = vcvt.s32.f32 %v230
      %v248 = vlaneseq
      %v249 = vshrl.u32 %v248, 7
      %v250 = vsub.s32 0, %v249
      %v251 = vrot.slane %v211, %v250
      %v252 = vlaneseq
      %v253 = vshrl.u32 %v252, 7
      %v254 = vsub.s32 1, %v253
      %v255 = vrot.slane %v211, %v254
      %v258 = vsub.f32 %v251, %v231
      %v259 = vsub.f32 %v255, %v231
      %v260 = vsub.f32 %v251, %v232
      %v261 = vsub.f32 %v255, %v232
      %v262 = vsub.f32 %v251, %v233
      %v263 = vsub.f32 %v255, %v233
      %v264 = vsub.f32 %v251, %v234
      %v265 = vsub.f32 %v255, %v234
      %v266 = vsub.f32 %v251, %v235
      %v267 = vsub.f32 %v255, %v235
      %v268 = vsub.f32 %v251, %v236
      %v269 = vsub.f32 %v255, %v236
      %v270 = vsub.f32 %v251, %v237
      %v271 = vsub.f32 %v255, %v237
      %v272 = vsub.f32 %v251, %v238
      %v273 = vsub.f32 %v255, %v238
      %v274 = vsub.f32 %v251, %v239
      %v275 = vsub.f32 %v255, %v239
      %v276 = vsub.f32 %v251, %v240
      %v277 = vsub.f32 %v255, %v240
      %v278 = vsub.f32 %v251, %v241
      %v279 = vsub.f32 %v255, %v241
      %v280 = vsub.f32 %v251, %v242
      %v281 = vsub.f32 %v255, %v242
      %v282 = vsub.f32 %v251, %v243
      %v283 = vsub.f32 %v255, %v243
      %v284 = vsub.f32 %v251, %v244
      %v285 = vsub.f32 %v255, %v244
      %v286 = vsub.f32 %v251, %v245
      %v287 = vsub.f32 %v255, %v245
      %v288 = vsub.f32 %v251, %v246
      %v289 = vsub.f32 %v255, %v246
      %v290 = vand.u32 2147483647, %v258
      %v291 = vand.u32 2147483647, %v259
      %v292 = vand.u32 2147483647, %v260
      %v293 = vand.u32 2147483647, %v261
      %v294 = vand.u32 2147483647, %v262
      %v295 = vand.u32 2147483647, %v263
      %v296 = vand.u32 2147483647, %v264
      %v297 = vand.u32 2147483647, %v265
      %v298 = vand.u32 2147483647, %v266
      %v299 = vand.u32 2147483647, %v267
      %v300 = vand.u32 2147483647, %v268
      %v301 = vand.u32 2147483647, %v269
      %v302 = vand.u32 2147483647, %v270
      %v303 = vand.u32 2147483647, %v271
      %v304 = vand.u32 2147483647, %v272
      %v305 = vand.u32 2147483647, %v273
      %v306 = vand.u32 2147483647, %v274
      %v307 = vand.u32 2147483647, %v275
      %v308 = vand.u32 2147483647, %v276
      %v309 = vand.u32 2147483647, %v277
      %v310 = vand.u32 2147483647, %v278
      %v311 = vand.u32 2147483647, %v279
      %v312 = vand.u32 2147483647, %v280
      %v313 = vand.u32 2147483647, %v281
      %v314 = vand.u32 2147483647, %v282
      %v315 = vand.u32 2147483647, %v283
      %v316 = vand.u32 2147483647, %v284
      %v317 = vand.u32 2147483647, %v285
      %v318 = vand.u32 2147483647, %v286
      %v319 = vand.u32 2147483647, %v287
      %v320 = vand.u32 2147483647, %v288
      %v321 = vand.u32 2147483647, %v289
      %v322 = vsub.f32 1.0, %v290
      %v323 = vsub.f32 1.0, %v291
      %v324 = vsub.f32 1.0, %v292
      %v325 = vsub.f32 1.0, %v293
      %v326 = vsub.f32 1.0, %v294
      %v327 = vsub.f32 1.0, %v295
      %v328 = vsub.f32 1.0, %v296
      %v329 = vsub.f32 1.0, %v297
      %v330 = vsub.f32 1.0, %v298
      %v331 = vsub.f32 1.0, %v299
      %v332 = vsub.f32 1.0, %v300
      %v333 = vsub.f32 1.0, %v301
      %v334 = vsub.f32 1.0, %v302
      %v335 = vsub.f32 1.0, %v303
      %v336 = vsub.f32 1.0, %v304
      %v337 = vsub.f32 1.0, %v305
      %v338 = vsub.f32 1.0, %v306
      %v339 = vsub.f32 1.0, %v307
      %v340 = vsub.f32 1.0, %v308
      %v341 = vsub.f32 1.0, %v309
      %v342 = vsub.f32 1.0, %v310
      %v343 = vsub.f32 1.0, %v311
      %v344 = vsub.f32 1.0, %v312
      %v345 = vsub.f32 1.0, %v313
      %v346 = vsub.f32 1.0, %v314
      %v347 = vsub.f32 1.0, %v315
      %v348 = vsub.f32 1.0, %v316
      %v349 = vsub.f32 1.0, %v317
      %v350 = vsub.f32 1.0, %v318
      %v351 = vsub.f32 1.0, %v319
      %v352 = vsub.f32 1.0, %v320
      %v353 = vsub.f32 1.0, %v321
      %v354 = vmax.f32 %v322, 0.0
      %v355 = vmax.f32 %v323, 0.0
      %v356 = vmax.f32 %v324, 0.0
      %v357 = vmax.f32 %v325, 0.0
      %v358 = vmax.f32 %v326, 0.0
      %v359 = vmax.f32 %v327, 0.0
      %v360 = vmax.f32 %v328, 0.0
      %v361 = vmax.f32 %v329, 0.0
      %v362 = vmax.f32 %v330, 0.0
      %v363 = vmax.f32 %v331, 0.0
      %v364 = vmax.f32 %v332, 0.0
      %v365 = vmax.f32 %v333, 0.0
      %v366 = vmax.f32 %v334, 0.0
      %v367 = vmax.f32 %v335, 0.0
      %v368 = vmax.f32 %v336, 0.0
      %v369 = vmax.f32 %v337, 0.0
      %v370 = vmax.f32 %v338, 0.0
      %v371 = vmax.f32 %v339, 0.0
      %v372 = vmax.f32 %v340, 0.0
      %v373 = vmax.f32 %v341, 0.0
      %v374 = vmax.f32 %v342, 0.0
      %v375 = vmax.f32 %v343, 0.0
      %v376 = vmax.f32 %v344, 0.0
      %v377 = vmax.f32 %v345, 0.0
      %v378 = vmax.f32 %v346, 0.0
      %v379 = vmax.f32 %v347, 0.0
      %v380 = vmax.f32 %v348, 0.0
      %v381 = vmax.f32 %v349, 0.0
      %v382 = vmax.f32 %v350, 0.0
      %v383 = vmax.f32 %v351, 0.0
      %v384 = vmax.f32 %v352, 0.0
      %v385 = vmax.f32 %v353, 0.0
      %386 = vmatprep.subr.mxu0 %v385
      %387 = vmatpush1.msra.mxu0 %v384
      %388 = vmatprep.subr.mxu0 %v383
      %389 = vmatpush1.msra.mxu0 %v382
      %390 = vmatprep.subr.mxu0 %v381
      %391 = vmatpush1.msra.mxu0 %v380
      %392 = vmatprep.subr.mxu0 %v379
      %393 = vmatpush1.msra.mxu0 %v378
      %394 = vmatprep.subr.mxu0 %v377
      %395 = vmatpush1.msra.mxu0 %v376
      %396 = vmatprep.subr.mxu0 %v375
      %397 = vmatpush1.msra.mxu0 %v374
      %398 = vmatprep.subr.mxu0 %v373
      %399 = vmatpush1.msra.mxu0 %v372
      %400 = vmatprep.subr.mxu0 %v371
      %401 = vmatpush1.msra.mxu0 %v370
      %402 = vmatprep.subr.mxu0 %v369
      %403 = vmatpush1.msra.mxu0 %v368
      %404 = vmatprep.subr.mxu0 %v367
      %405 = vmatpush1.msra.mxu0 %v366
      %406 = vmatprep.subr.mxu0 %v365
      %407 = vmatpush1.msra.mxu0 %v364
      %408 = vmatprep.subr.mxu0 %v363
      %409 = vmatpush1.msra.mxu0 %v362
      %410 = vmatprep.subr.mxu0 %v361
      %411 = vmatpush1.msra.mxu0 %v360
      %412 = vmatprep.subr.mxu0 %v359
      %413 = vmatpush1.msra.mxu0 %v358
      %414 = vmatprep.subr.mxu0 %v357
      %415 = vmatpush1.msra.mxu0 %v356
      %416 = vmatprep.subr.mxu0 %v355
      %417 = vmatpush1.msra.mxu0 %v354
      %418 = vmatprep.subr.mxu0 0.0
      %419 = vmatpush2.msra.mxu0 0.0
      %420 = vmatprep.subr.mxu0 0.0
      %421 = vmatpush2.msra.mxu0 0.0
      %422 = vmatprep.subr.mxu0 0.0
      %423 = vmatpush2.msra.mxu0 0.0
      %424 = vmatprep.subr.mxu0 0.0
      %425 = vmatpush2.msra.mxu0 0.0
      %426 = vmatprep.subr.mxu0 0.0
      %427 = vmatpush2.msra.mxu0 0.0
      %428 = vmatprep.subr.mxu0 0.0
      %429 = vmatpush2.msra.mxu0 0.0
      %430 = vmatprep.subr.mxu0 0.0
      %431 = vmatpush2.msra.mxu0 0.0
      %432 = vmatprep.subr.mxu0 0.0
      %433 = vmatpush2.msra.mxu0 0.0
      %434 = vmatprep.subr.mxu0 0.0
      %435 = vmatpush2.msra.mxu0 0.0
      %436 = vmatprep.subr.mxu0 0.0
      %437 = vmatpush2.msra.mxu0 0.0
      %438 = vmatprep.subr.mxu0 0.0
      %439 = vmatpush2.msra.mxu0 0.0
      %440 = vmatprep.subr.mxu0 0.0
      %441 = vmatpush2.msra.mxu0 0.0
      %442 = vmatprep.subr.mxu0 0.0
      %443 = vmatpush2.msra.mxu0 0.0
      %444 = vmatprep.subr.mxu0 0.0
      %445 = vmatpush2.msra.mxu0 0.0
      %446 = vmatprep.subr.mxu0 0.0
      %447 = vmatpush2.msra.mxu0 0.0
      %448 = vmatprep.subr.mxu0 0.0
      %449 = vmatpush2.msra.mxu0 0.0
      %450 = vmatprep.mubr.f32.mxu0 0.0
      %451 = vmatmul.mubr.f32.gmra.mxu0 %v203
      %v452 = vpop.f32.mrf.mxu0
      %v453 = vadd.f32 0.0, %v452
      %v454 = vpop.f32.mrf.mxu0
      %v455 = vadd.f32 0.0, %v454
      %456 = vmatprep.mubr.f32.mxu0 0.0
      %457 = vmatmul.mubr.f32.gmra.mxu0 %v204
      %v458 = vpop.f32.mrf.mxu0
      %v459 = vadd.f32 0.0, %v458
      %v460 = vpop.f32.mrf.mxu0
      %v461 = vadd.f32 0.0, %v460
      %462 = vmatprep.mubr.f32.mxu0 0.0
      %463 = vmatmul.mubr.f32.gmra.mxu0 %v205
      %v464 = vpop.f32.mrf.mxu0
      %v465 = vadd.f32 0.0, %v464
      %v466 = vpop.f32.mrf.mxu0
      %v467 = vadd.f32 0.0, %v466
      %468 = vmatprep.mubr.f32.mxu0 0.0
      %469 = vmatmul.mubr.f32.gmra.mxu0 %v206
      %v470 = vpop.f32.mrf.mxu0
      %v471 = vadd.f32 0.0, %v470
      %v472 = vpop.f32.mrf.mxu0
      %v473 = vadd.f32 0.0, %v472
      %474 = vmatprep.mubr.f32.mxu0 0.0
      %475 = vmatmul.mubr.f32.gmra.mxu0 %v207
      %v476 = vpop.f32.mrf.mxu0
      %v477 = vadd.f32 0.0, %v476
      %v478 = vpop.f32.mrf.mxu0
      %v479 = vadd.f32 0.0, %v478
      %480 = vmatprep.mubr.f32.mxu0 0.0
      %481 = vmatmul.mubr.f32.gmra.mxu0 %v208
      %v482 = vpop.f32.mrf.mxu0
      %v483 = vadd.f32 0.0, %v482
      %v484 = vpop.f32.mrf.mxu0
      %v485 = vadd.f32 0.0, %v484
      %486 = vmatprep.mubr.f32.mxu0 0.0
      %487 = vmatmul.mubr.f32.gmra.mxu0 %v209
      %v488 = vpop.f32.mrf.mxu0
      %v489 = vadd.f32 0.0, %v488
      %v490 = vpop.f32.mrf.mxu0
      %v491 = vadd.f32 0.0, %v490
      %492 = vmatprep.mubr.f32.mxu0 0.0
      %493 = vmatmul.mubr.f32.gmra.mxu0 %v210
      %v494 = vpop.f32.mrf.mxu0
      %v495 = vadd.f32 0.0, %v494
      %v496 = vpop.f32.mrf.mxu0
      %v497 = vadd.f32 0.0, %v496
      %498 = vdwg.mxu0
      %v500 = vlaneseq
      %v501 = vshrl.u32 %v500, 7
      %v502 = vsub.s32 0, %v501
      %v503 = vrot.slane %v213, %v502
      %v504 = vlaneseq
      %v505 = vshrl.u32 %v504, 7
      %v506 = vsub.s32 1, %v505
      %v507 = vrot.slane %v213, %v506
      %v510 = vsub.f32 %v503, %v231
      %v511 = vsub.f32 %v507, %v231
      %v512 = vsub.f32 %v503, %v232
      %v513 = vsub.f32 %v507, %v232
      %v514 = vand.u32 2147483647, %v510
      %v515 = vand.u32 2147483647, %v511
      %v516 = vand.u32 2147483647, %v512
      %v517 = vand.u32 2147483647, %v513
      %v518 = vsub.f32 1.0, %v514
      %v519 = vsub.f32 1.0, %v515
      %v520 = vsub.f32 1.0, %v516
      %v521 = vsub.f32 1.0, %v517
      %v522 = vmax.f32 %v518, 0.0
      %v523 = vmax.f32 %v519, 0.0
      %v524 = vmax.f32 %v520, 0.0
      %v525 = vmax.f32 %v521, 0.0
      %v526 = vmul.f32 %v453, %v522
      %v527 = vmul.f32 %v455, %v523
      %v528 = vmul.f32 %v459, %v524
      %v529 = vmul.f32 %v461, %v525
      %v530 = vmul.f32 %v465, %v522
      %v531 = vmul.f32 %v467, %v523
      %v532 = vmul.f32 %v471, %v524
      %v533 = vmul.f32 %v473, %v525
      %v534 = vmul.f32 %v477, %v522
      %v535 = vmul.f32 %v479, %v523
      %v536 = vmul.f32 %v483, %v524
      %v537 = vmul.f32 %v485, %v525
      %v538 = vmul.f32 %v489, %v522
      %v539 = vmul.f32 %v491, %v523
      %v540 = vmul.f32 %v495, %v524
      %v541 = vmul.f32 %v497, %v525
      %v542 = vadd.f32 %v526, %v528
      %v543 = vrot.slane %v542, 4
      %v544 = vadd.f32 %v542, %v543
      %v545 = vrot.slane %v544, 2
      %v546 = vadd.f32 %v544, %v545
      %v547 = vrot.slane %v546, 1
      %v548 = vadd.f32 %v546, %v547
      %v549 = vadd.f32 %v527, %v529
      %v550 = vrot.slane %v549, 4
      %v551 = vadd.f32 %v549, %v550
      %v552 = vrot.slane %v551, 2
      %v553 = vadd.f32 %v551, %v552
      %v554 = vrot.slane %v553, 1
      %v555 = vadd.f32 %v553, %v554
      %v556 = vadd.f32 %v530, %v532
      %v557 = vrot.slane %v556, 4
      %v558 = vadd.f32 %v556, %v557
      %v559 = vrot.slane %v558, 2
      %v560 = vadd.f32 %v558, %v559
      %v561 = vrot.slane %v560, 1
      %v562 = vadd.f32 %v560, %v561
      %v563 = vadd.f32 %v531, %v533
      %v564 = vrot.slane %v563, 4
      %v565 = vadd.f32 %v563, %v564
      %v566 = vrot.slane %v565, 2
      %v567 = vadd.f32 %v565, %v566
      %v568 = vrot.slane %v567, 1
      %v569 = vadd.f32 %v567, %v568
      %v570 = vadd.f32 %v534, %v536
      %v571 = vrot.slane %v570, 4
      %v572 = vadd.f32 %v570, %v571
      %v573 = vrot.slane %v572, 2
      %v574 = vadd.f32 %v572, %v573
      %v575 = vrot.slane %v574, 1
      %v576 = vadd.f32 %v574, %v575
      %v577 = vadd.f32 %v535, %v537
      %v578 = vrot.slane %v577, 4
      %v579 = vadd.f32 %v577, %v578
      %v580 = vrot.slane %v579, 2
      %v581 = vadd.f32 %v579, %v580
      %v582 = vrot.slane %v581, 1
      %v583 = vadd.f32 %v581, %v582
      %v584 = vadd.f32 %v538, %v540
      %v585 = vrot.slane %v584, 4
      %v586 = vadd.f32 %v584, %v585
      %v587 = vrot.slane %v586, 2
      %v588 = vadd.f32 %v586, %v587
      %v589 = vrot.slane %v588, 1
      %v590 = vadd.f32 %v588, %v589
      %v591 = vadd.f32 %v539, %v541
      %v592 = vrot.slane %v591, 4
      %v593 = vadd.f32 %v591, %v592
      %v594 = vrot.slane %v593, 2
      %v595 = vadd.f32 %v593, %v594
      %v596 = vrot.slane %v595, 1
      %v597 = vadd.f32 %v595, %v596
      %v598 = vadd.f32 %v548, 0.0
      %v599 = vadd.f32 %v555, 0.0
      %v600 = vadd.f32 %v562, 0.0
      %v601 = vadd.f32 %v569, 0.0
      %v602 = vadd.f32 %v576, 0.0
      %v603 = vadd.f32 %v583, 0.0
      %v604 = vadd.f32 %v590, 0.0
      %v605 = vadd.f32 %v597, 0.0
      %v614 = vcombine.low %v598, %v599
      %v615 = vcombine.low %v600, %v601
      %v616 = vcombine.low %v602, %v603
      %v617 = vcombine.low %v604, %v605
      %v618 = vrot.slane %v615, 7
      %vm619 = vcmask 1041409
      %v620 = vsel %vm619, %v618, %v614
      %vm621 = vcmask 1045509
      %v622 = vsel %vm621, %v618, %v620
      %v623 = vrot.slane %v616, 6
      %vm624 = vcmask 1042434
      %v625 = vsel %vm624, %v623, %v622
      %vm626 = vcmask 1046534
      %v627 = vsel %vm626, %v623, %v625
      %v628 = vrot.slane %v617, 5
      %vm629 = vcmask 1043459
      %v630 = vsel %vm629, %v628, %v627
      %vm631 = vcmask 1047559
      %v632 = vsel %vm631, %v628, %v630
      %634 = vst [vmem:[%s201] sm:$0xff] %v632
      %s635 = smul.u32 2, %s18
      %p636 = scmp.lt.s32.totalorder %s17, 1
      %s637 = scalar_select %p636, %s17, 1
      %p638 = scmp.lt.s32.totalorder %s635, 1
      %s639 = scalar_select %p638, %s635, 1
      %s640 = smul.addr %s637, 2
      %s641 = sadd.s32 %s639, %s640
      %s642 = smul.addr %s641, 4
      %s643 = scalar_lea.vmem %s2, %s642
      // Predicated region
      $region29: #{spatial_transformer.1} parent=27 // pred_check
        %p644 = pneg %p99
      $region30: #{spatial_transformer.1} parent=27 // pred_check_branch
        %646 = sbr.rel (%p644) target = $region32
      $region31: #{spatial_transformer.1} parent=27 // pred_region
        %s647 = smul.u32 2, %s18
      $region32: #{spatial_transformer.1} parent=27 // pred_fallthru
        _
    $region28: #{spatial_transformer.1} parent=5 // pred_fallthru
      _
    %p648 = scmp.le.s32.totalorder 2, %s8
    // Predicated region
    $region33: #{spatial_transformer.1} parent=5 // pred_check
      %p649 = pneg %p648
    $region34: #{spatial_transformer.1} parent=5 // pred_check_branch
      %651 = sbr.rel (%p649) target = $region36
    $region35: #{spatial_transformer.1} parent=5 // pred_region
      %s652 = ssub.s32 %s8, 2
      // Predicated region
      $region37: #{spatial_transformer.1} parent=35 // pred_check
        %p653 = pneg %p105
      $region38: #{spatial_transformer.1} parent=35 // pred_check_branch
        %655 = sbr.rel (%p653) target = $region40
      $region39: #{spatial_transformer.1} parent=35 // pred_region
        %s656 = smul.u32 2, %s20
        %p657 = scmp.lt.s32.totalorder %s19, 1
        %s658 = scalar_select %p657, %s19, 1
        %p659 = scmp.lt.s32.totalorder %s656, 1
        %s660 = scalar_select %p659, %s656, 1
        %s661 = smul.addr %s658, 2
        %s662 = sadd.s32 %s660, %s661
        %s663 = smul.addr %s662, 4
        %s664 = scalar_lea.vmem %s2, %s663
      $region40: #{spatial_transformer.1} parent=35 // pred_fallthru
        _
    $region36: #{spatial_transformer.1} parent=5 // pred_fallthru
      _
  $region6: #{spatial_transformer.1} parent=0 // loop_footer
    %s12 = sadd.s32 1, %s8
  $region7: #{spatial_transformer.1} parent=0 // loop_footer_branch
    %7 = sbr.rel target = $region3
  $region8: #{spatial_transformer.1} parent=0 // loop_exit
    _

</llo_original>
